<compile_context>
chip_gen: v6e
topology: v6e:2x2x1
jax: 0.10.0
libtpu: 0.0.40
codegen_flags: <defaults>
</compile_context>

<pallas_src>
import functools
import math

import jax
import jax.numpy as jnp
import numpy as np
from jax.experimental import pallas as pl
from jax.experimental.pallas import tpu as pltpu


def _round_up(x, m):
    return ((x + m - 1) // m) * m


def _so3_kernel(x_ref,
                wfused_ref, b1_ref, gamma_ref, beta_ref, w2_ref, b2_ref,
                o_ref,
                *, batch_tile, num_vec, dk, f_out, mxu_dtype):
    """One batch tile per grid step; everything resident in VMEM."""
    bt, n = batch_tile, num_vec
    f_in = x_ref.shape[-1]

    # ---- fused input projection -------------------------------------------
    # W_fused columns: [ wv@wo@w1 | ws@w1 | wq | wk ]  (wo, ws folded through
    # the first FC layer on the host -- exact because LayerNorm follows w1).
    xf = x_ref[...].reshape(bt * n, f_in).astype(mxu_dtype)
    proj = jnp.dot(xf, wfused_ref[...],
                   preferred_element_type=jnp.float32)       # (bt*n, 2F_out+2dk)

    v_flat = proj[:, :f_out]                                  # x @ (wv wo w1)
    s_flat = proj[:, f_out:2 * f_out]                         # x @ (ws w1)
    q = proj[:, 2 * f_out:2 * f_out + dk]
    k = proj[:, 2 * f_out + dk:2 * f_out + 2 * dk]

    q3 = q.reshape(bt, n, dk).astype(mxu_dtype)
    k3 = k.reshape(bt, n, dk).astype(mxu_dtype)
    v3 = v_flat.reshape(bt, n, f_out).astype(mxu_dtype)

    # ---- degree-0 self-attention over the num_vectors axis -----------------
    scale = 1.0 / math.sqrt(dk)
    s = jnp.einsum("bnd,bmd->bnm", q3, k3,
                   preferred_element_type=jnp.float32) * scale   # (bt, n, n)
    s = s - jnp.max(s, axis=-1, keepdims=True)
    p = jnp.exp(s)
    p = p * pl.reciprocal(jnp.sum(p, axis=-1, keepdims=True), approx=True)
    a = jnp.einsum("bnm,bmd->bnd", p.astype(mxu_dtype), v3,
                   preferred_element_type=jnp.float32)           # (bt, n, F_out)

    # ---- FC block (w1 already folded): LayerNorm -> ReLU -> Linear ---------
    h1 = a.reshape(bt * n, f_out) + s_flat + b1_ref[...]
    mu = jnp.mean(h1, axis=-1, keepdims=True)
    xc = h1 - mu
    var = jnp.mean(xc * xc, axis=-1, keepdims=True)
    hn = xc * jax.lax.rsqrt(var + jnp.float32(1e-5)) * gamma_ref[...] + beta_ref[...]
    hr = jnp.maximum(hn, jnp.float32(0.0))
    out = jnp.dot(hr.astype(mxu_dtype), w2_ref[...],
                  preferred_element_type=jnp.float32) + b2_ref[...]

    # Lane-dense (.., 128k) store; wrapper slices back to d_out.
    o_ref[...] = out.reshape(bt, n, -1).astype(o_ref.dtype)


def fuse_params(params, mxu_dtype=jnp.bfloat16):
    """Host-side algebraic fusion / padding of the module parameters."""
    (wq, wk, wv, wo, ws, w1, b1, gamma, beta, w2, b2) = params
    f_in, dk = wq.shape
    f_out = w1.shape[1]
    d_out = w2.shape[1]
    d_pad = _round_up(d_out, 128)

    wvo = (wv @ wo) @ w1          # (F_in, F_out): value path folded through w1
    wsw1 = ws @ w1                # (F_in, F_out): skip  path folded through w1
    w_fused = jnp.concatenate([wvo, wsw1, wq, wk], axis=1)   # (F_in, 2F_out+2dk)

    w2_pad = jnp.zeros((f_out, d_pad), jnp.float32).at[:, :d_out].set(w2)
    b2_pad = jnp.zeros((1, d_pad), jnp.float32).at[:, :d_out].set(
        b2.reshape(1, -1))

    fused = (
        w_fused.astype(mxu_dtype),                      # MXU operand -> bf16
        b1.reshape(1, f_out).astype(jnp.float32),       # VPU work stays f32
        gamma.reshape(1, f_out).astype(jnp.float32),
        beta.reshape(1, f_out).astype(jnp.float32),
        w2_pad.astype(mxu_dtype),
        b2_pad,
    )
    meta = dict(dk=dk, f_out=f_out, d_out=d_out, d_pad=d_pad)
    return fused, meta


def so3_transformer_forward(x, params, *, batch_tile=None,
                            mxu_dtype=jnp.bfloat16):
    """x: [B, N, F_in] float32 -> [B, N, d_out] float32."""
    B, N, f_in = x.shape
    fused, meta = fuse_params(params, mxu_dtype)
    dk, f_out, d_out, d_pad = (meta["dk"], meta["f_out"],
                               meta["d_out"], meta["d_pad"])

    if batch_tile is None:
        # Tiny problem: one grid step amortizes the ~0.35us per-step overhead.
        # For large B on v7x, pass batch_tile=B//2 (or smaller) so the
        # "parallel" batch axis feeds both TensorCores.
        batch_tile = B
    assert B % batch_tile == 0, "batch_tile must divide B"
    num_tiles = B // batch_tile

    kernel = functools.partial(
        _so3_kernel, batch_tile=batch_tile, num_vec=N, dk=dk, f_out=f_out,
        mxu_dtype=mxu_dtype)

    def const_spec(arr):
        nd = arr.ndim
        return pl.BlockSpec(arr.shape, lambda b, _nd=nd: (0,) * _nd)

    # NOTE: weight blocks are grid-invariant; at production F_out consider
    # pipeline_mode=pl.Buffered(1) on them (and a raised vmem_limit_bytes on
    # v5e/v6e) -- negligible at these sizes.
    in_specs = [pl.BlockSpec((batch_tile, N, f_in), lambda b: (b, 0, 0))]
    in_specs += [const_spec(p) for p in fused]

    out_spec = pl.BlockSpec((batch_tile, N, d_pad), lambda b: (b, 0, 0))

    out_padded = pl.pallas_call(
        kernel,
        out_shape=jax.ShapeDtypeStruct((B, N, d_pad), jnp.float32),
        grid_spec=pltpu.PrefetchScalarGridSpec(
            num_scalar_prefetch=0,
            grid=(num_tiles,),
            in_specs=in_specs,
            out_specs=out_spec,
        ),
        compiler_params=pltpu.CompilerParams(
            dimension_semantics=("parallel",)),
    )(x, *fused)

    return out_padded[..., :d_out]


# ----------------------------- references -----------------------------------
def reference_forward(x, params):
    """Pure-JAX f32 reference of the original (unfused) module math."""
    (wq, wk, wv, wo, ws, w1, b1, gamma, beta, w2, b2) = params
    q = x @ wq
    k = x @ wk
    v = x @ wv
    dk = q.shape[-1]
    s = jnp.einsum("bnd,bmd->bnm", q, k) / jnp.sqrt(jnp.float32(dk))
    p = jax.nn.softmax(s, axis=-1)
    a = jnp.einsum("bnm,bmd->bnd", p, v)
    h = a @ wo + x @ ws
    h1 = h @ w1 + b1[0]
    mu = jnp.mean(h1, axis=-1, keepdims=True)
    var = jnp.mean((h1 - mu) ** 2, axis=-1, keepdims=True)
    hn = (h1 - mu) * jax.lax.rsqrt(var + 1e-5) * gamma[0] + beta[0]
    hr = jax.nn.relu(hn)
    return hr @ w2 + b2[0]


def reference_forward_fused(x, fused, *, dk, f_out, mxu_dtype):
    """Pure-JAX replica of the kernel's numerics (fused weights, mxu_dtype)."""
    w_fused, b1, gamma, beta, w2p, b2p = fused
    B, N, f_in = x.shape
    xf = x.reshape(B * N, f_in).astype(mxu_dtype)
    proj = jnp.dot(xf, w_fused, preferred_element_type=jnp.float32)
    v_flat = proj[:, :f_out]
    s_flat = proj[:, f_out:2 * f_out]
    q = proj[:, 2 * f_out:2 * f_out + dk]
    k = proj[:, 2 * f_out + dk:2 * f_out + 2 * dk]
    q3 = q.reshape(B, N, dk).astype(mxu_dtype)
    k3 = k.reshape(B, N, dk).astype(mxu_dtype)
    v3 = v_flat.reshape(B, N, f_out).astype(mxu_dtype)
    s = jnp.einsum("bnd,bmd->bnm", q3, k3,
                   preferred_element_type=jnp.float32) / math.sqrt(dk)
    p = jax.nn.softmax(s, axis=-1)
    a = jnp.einsum("bnm,bmd->bnd", p.astype(mxu_dtype), v3,
                   preferred_element_type=jnp.float32)
    h1 = a.reshape(B * N, f_out) + s_flat + b1
    mu = jnp.mean(h1, axis=-1, keepdims=True)
    var = jnp.mean((h1 - mu) ** 2, axis=-1, keepdims=True)
    hn = (h1 - mu) * jax.lax.rsqrt(var + 1e-5) * gamma + beta
    hr = jax.nn.relu(hn)
    out = jnp.dot(hr.astype(mxu_dtype), w2p,
                  preferred_element_type=jnp.float32) + b2p
    return out.reshape(B, N, -1)


def init_params(key, *, input_feature_size, num_channels, num_degrees, div, d_out):
    """Deterministic synthetic parameter init (shapes from the module __init__)."""
    out_feat = num_degrees * num_channels * 2          # fibers['out'].n_features
    mid_dim = (num_degrees * num_channels) // div      # attention head width

    keys = jax.random.split(key, 8)

    def kaiming(k, shape):
        fan_in = shape[0]
        bound = np.sqrt(6.0 / fan_in)
        return jax.random.uniform(k, shape, jnp.float32, -bound, bound)

    wq = kaiming(keys[0], (input_feature_size, mid_dim))
    wk = kaiming(keys[1], (input_feature_size, mid_dim))
    wv = kaiming(keys[2], (input_feature_size, mid_dim))
    wo = kaiming(keys[3], (mid_dim, out_feat))
    ws = kaiming(keys[4], (input_feature_size, out_feat))

    # FCblock[0] / FCblock[3]: kaiming_uniform_ per the module __init__
    w1 = kaiming(keys[5], (out_feat, out_feat))
    b1 = jnp.zeros((1, out_feat), jnp.float32)
    gamma = jnp.ones((1, out_feat), jnp.float32)        # LayerNorm weight
    beta = jnp.zeros((1, out_feat), jnp.float32)        # LayerNorm bias
    w2 = kaiming(keys[6], (out_feat, d_out))
    b2 = jnp.zeros((1, d_out), jnp.float32)

    return (wq, wk, wv, wo, ws, w1, b1, gamma, beta, w2, b2)


if __name__ == "__main__":
    # Shapes consistent with the module's forward contract:
    #   x: [Batch_size, num_vectors, input_feature_size]
    B, N = 2, 8
    input_feature_size = 4
    num_channels = 16
    num_degrees = 4
    div = 4
    d_out = 10

    key = jax.random.PRNGKey(0)
    kx, kp = jax.random.split(key)
    x = jax.random.normal(kx, (B, N, input_feature_size), jnp.float32)

    params = init_params(
        kp,
        input_feature_size=input_feature_size,
        num_channels=num_channels,
        num_degrees=num_degrees,
        div=div,
        d_out=d_out,
    )

    # 1) f32 MXU operands: verify the fused kernel reproduces the original
    #    (unfused) module math.
    out_f32 = jax.block_until_ready(
        so3_transformer_forward(x, params, mxu_dtype=jnp.float32))
    ref_f32 = reference_forward(x, params)
    np.testing.assert_allclose(np.asarray(out_f32), np.asarray(ref_f32),
                               rtol=5e-3, atol=5e-3)

    # 2) production path (bf16 MXU operands, f32 accumulation): verify the
    #    Pallas kernel against a matched pure-JAX replica of its numerics.
    out_bf16 = jax.block_until_ready(so3_transformer_forward(x, params))
    fused, meta = fuse_params(params, jnp.bfloat16)
    ref_bf16 = reference_forward_fused(
        x, fused, dk=meta["dk"], f_out=meta["f_out"], mxu_dtype=jnp.bfloat16)
    ref_bf16 = ref_bf16[..., :d_out]
    np.testing.assert_allclose(np.asarray(out_bf16), np.asarray(ref_bf16),
                               rtol=5e-3, atol=5e-3)

    assert out_f32.shape == (B, N, d_out)
    assert out_bf16.shape == (B, N, d_out)
    print("KERNEL_OK")
</pallas_src>

<mosaic_0001>
module attributes {stable_mosaic.version = 11 : i64} {
  func.func @_so3_kernel(%arg0: i32, %arg1: memref<2x8x4xf32, #tpu.memory_space<vmem>>, %arg2: memref<4x288xf32, #tpu.memory_space<vmem>>, %arg3: memref<1x128xf32, #tpu.memory_space<vmem>>, %arg4: memref<1x128xf32, #tpu.memory_space<vmem>>, %arg5: memref<1x128xf32, #tpu.memory_space<vmem>>, %arg6: memref<128x128xf32, #tpu.memory_space<vmem>>, %arg7: memref<1x128xf32, #tpu.memory_space<vmem>>, %arg8: memref<2x8x128xf32, #tpu.memory_space<vmem>>) attributes {dimension_semantics = [#tpu.dimension_semantics<parallel>], iteration_bounds = array<i64: 1>, scalar_prefetch = 0 : i64, scratch_operands = 0 : i64, tpu.core_type = #tpu.core_type<tc>, window_params = [{transform_indices = @transform_0, window_bounds = array<i64: 2, 8, 4>}, {pipeline_mode = #tpu.pipeline_mode<synchronous>, transform_indices = @transform_1, window_bounds = array<i64: 4, 288>}, {pipeline_mode = #tpu.pipeline_mode<synchronous>, transform_indices = @transform_2, window_bounds = array<i64: 1, 128>}, {pipeline_mode = #tpu.pipeline_mode<synchronous>, transform_indices = @transform_3, window_bounds = array<i64: 1, 128>}, {pipeline_mode = #tpu.pipeline_mode<synchronous>, transform_indices = @transform_4, window_bounds = array<i64: 1, 128>}, {pipeline_mode = #tpu.pipeline_mode<synchronous>, transform_indices = @transform_5, window_bounds = array<i64: 128, 128>}, {pipeline_mode = #tpu.pipeline_mode<synchronous>, transform_indices = @transform_6, window_bounds = array<i64: 1, 128>}, {transform_indices = @transform_7, window_bounds = array<i64: 2, 8, 128>}]} {
    %c0 = arith.constant 0 : index
    %c0_0 = arith.constant 0 : index
    %c0_1 = arith.constant 0 : index
    %0 = vector.load %arg1[%c0, %c0_0, %c0_1] : memref<2x8x4xf32, #tpu.memory_space<vmem>>, vector<2x8x4xf32>
    %1 = vector.shape_cast %0 : vector<2x8x4xf32> to vector<16x4xf32>
    %c0_2 = arith.constant 0 : index
    %c0_3 = arith.constant 0 : index
    %2 = vector.load %arg2[%c0_2, %c0_3] : memref<4x288xf32, #tpu.memory_space<vmem>>, vector<4x288xf32>
    %cst = arith.constant dense<0.000000e+00> : vector<16x288xf32>
    %3 = tpu.matmul %1, %2, %cst {dimension_numbers = #tpu.dot_dimension_numbers<[1], [0], [0], [1], [0, 0, 1, 1], [], []>} : vector<16x4xf32>, vector<4x288xf32>, vector<16x288xf32> -> vector<16x288xf32>
    %4 = vector.extract_strided_slice %3 {offsets = [0, 0], sizes = [16, 128], strides = [1, 1]} : vector<16x288xf32> to vector<16x128xf32>
    %5 = vector.extract_strided_slice %3 {offsets = [0, 128], sizes = [16, 128], strides = [1, 1]} : vector<16x288xf32> to vector<16x128xf32>
    %6 = vector.extract_strided_slice %3 {offsets = [0, 256], sizes = [16, 16], strides = [1, 1]} : vector<16x288xf32> to vector<16x16xf32>
    %7 = vector.extract_strided_slice %3 {offsets = [0, 272], sizes = [16, 16], strides = [1, 1]} : vector<16x288xf32> to vector<16x16xf32>
    %8 = vector.shape_cast %6 : vector<16x16xf32> to vector<2x8x16xf32>
    %9 = vector.shape_cast %7 : vector<16x16xf32> to vector<2x8x16xf32>
    %10 = vector.shape_cast %4 : vector<16x128xf32> to vector<2x8x128xf32>
    "tpu.trace_start"() <{level = 10 : i32, message = "bnd,bmd->bnm"}> : () -> ()
    %cst_4 = arith.constant dense<0.000000e+00> : vector<2x8x8xf32>
    %11 = tpu.matmul %8, %9, %cst_4 {dimension_numbers = #tpu.dot_dimension_numbers<[2], [2], [1], [1], [0, 0, 0, 1, 1, 1], [0], [0]>} : vector<2x8x16xf32>, vector<2x8x16xf32>, vector<2x8x8xf32> -> vector<2x8x8xf32>
    "tpu.trace_stop"() : () -> ()
    %cst_5 = arith.constant 2.500000e-01 : f32
    %12 = vector.broadcast %cst_5 : f32 to vector<2x8x8xf32>
    %13 = arith.mulf %11, %12 : vector<2x8x8xf32>
    %cst_6 = arith.constant dense<0xFF800000> : vector<2x8xf32>
    %14 = vector.multi_reduction <maximumf>, %13, %cst_6 [2] : vector<2x8x8xf32> to vector<2x8xf32>
    %15 = vector.shape_cast %14 : vector<2x8xf32> to vector<2x8x1xf32>
    %16 = vector.broadcast %15 : vector<2x8x1xf32> to vector<2x8x8xf32>
    %17 = arith.subf %13, %16 : vector<2x8x8xf32>
    %18 = math.exp %17 : vector<2x8x8xf32>
    %cst_7 = arith.constant dense<0.000000e+00> : vector<2x8xf32>
    %19 = vector.multi_reduction <add>, %18, %cst_7 [2] : vector<2x8x8xf32> to vector<2x8xf32>
    %20 = vector.shape_cast %19 : vector<2x8xf32> to vector<2x8x1xf32>
    %21 = tpu.reciprocal %20 {approx = true} : vector<2x8x1xf32> -> vector<2x8x1xf32>
    %22 = vector.broadcast %21 : vector<2x8x1xf32> to vector<2x8x8xf32>
    %23 = arith.mulf %18, %22 : vector<2x8x8xf32>
    "tpu.trace_start"() <{level = 10 : i32, message = "bnm,bmd->bnd"}> : () -> ()
    %cst_8 = arith.constant dense<0.000000e+00> : vector<2x8x128xf32>
    %24 = tpu.matmul %23, %10, %cst_8 {dimension_numbers = #tpu.dot_dimension_numbers<[2], [1], [1], [2], [0, 0, 0, 1, 1, 2], [0], [0]>} : vector<2x8x8xf32>, vector<2x8x128xf32>, vector<2x8x128xf32> -> vector<2x8x128xf32>
    "tpu.trace_stop"() : () -> ()
    %25 = vector.shape_cast %24 : vector<2x8x128xf32> to vector<16x128xf32>
    %26 = arith.addf %25, %5 : vector<16x128xf32>
    %c0_9 = arith.constant 0 : index
    %c0_10 = arith.constant 0 : index
    %27 = vector.load %arg3[%c0_9, %c0_10] : memref<1x128xf32, #tpu.memory_space<vmem>>, vector<1x128xf32>
    %28 = vector.broadcast %27 : vector<1x128xf32> to vector<16x128xf32>
    %29 = arith.addf %26, %28 : vector<16x128xf32>
    %cst_11 = arith.constant dense<0.000000e+00> : vector<16xf32>
    %30 = vector.multi_reduction <add>, %29, %cst_11 [1] : vector<16x128xf32> to vector<16xf32>
    %31 = vector.shape_cast %30 : vector<16xf32> to vector<16x1xf32>
    %cst_12 = arith.constant 1.280000e+02 : f32
    %32 = vector.broadcast %cst_12 : f32 to vector<16x1xf32>
    %33 = arith.divf %31, %32 : vector<16x1xf32>
    %34 = vector.broadcast %33 : vector<16x1xf32> to vector<16x128xf32>
    %35 = arith.subf %29, %34 : vector<16x128xf32>
    %36 = arith.mulf %35, %35 : vector<16x128xf32>
    %cst_13 = arith.constant dense<0.000000e+00> : vector<16xf32>
    %37 = vector.multi_reduction <add>, %36, %cst_13 [1] : vector<16x128xf32> to vector<16xf32>
    %38 = vector.shape_cast %37 : vector<16xf32> to vector<16x1xf32>
    %cst_14 = arith.constant 1.280000e+02 : f32
    %39 = vector.broadcast %cst_14 : f32 to vector<16x1xf32>
    %40 = arith.divf %38, %39 : vector<16x1xf32>
    %cst_15 = arith.constant 9.99999974E-6 : f32
    %41 = vector.broadcast %cst_15 : f32 to vector<16x1xf32>
    %42 = arith.addf %40, %41 : vector<16x1xf32>
    %43 = math.rsqrt %42 : vector<16x1xf32>
    %44 = vector.broadcast %43 : vector<16x1xf32> to vector<16x128xf32>
    %45 = arith.mulf %35, %44 : vector<16x128xf32>
    %c0_16 = arith.constant 0 : index
    %c0_17 = arith.constant 0 : index
    %46 = vector.load %arg4[%c0_16, %c0_17] : memref<1x128xf32, #tpu.memory_space<vmem>>, vector<1x128xf32>
    %47 = vector.broadcast %46 : vector<1x128xf32> to vector<16x128xf32>
    %48 = arith.mulf %45, %47 : vector<16x128xf32>
    %c0_18 = arith.constant 0 : index
    %c0_19 = arith.constant 0 : index
    %49 = vector.load %arg5[%c0_18, %c0_19] : memref<1x128xf32, #tpu.memory_space<vmem>>, vector<1x128xf32>
    %50 = vector.broadcast %49 : vector<1x128xf32> to vector<16x128xf32>
    %51 = arith.addf %48, %50 : vector<16x128xf32>
    %cst_20 = arith.constant 0.000000e+00 : f32
    %52 = vector.broadcast %cst_20 : f32 to vector<16x128xf32>
    %53 = arith.maximumf %51, %52 : vector<16x128xf32>
    %c0_21 = arith.constant 0 : index
    %c0_22 = arith.constant 0 : index
    %54 = vector.load %arg6[%c0_21, %c0_22] : memref<128x128xf32, #tpu.memory_space<vmem>>, vector<128x128xf32>
    %cst_23 = arith.constant dense<0.000000e+00> : vector<16x128xf32>
    %55 = tpu.matmul %53, %54, %cst_23 {dimension_numbers = #tpu.dot_dimension_numbers<[1], [0], [0], [1], [0, 0, 1, 1], [], []>} : vector<16x128xf32>, vector<128x128xf32>, vector<16x128xf32> -> vector<16x128xf32>
    %c0_24 = arith.constant 0 : index
    %c0_25 = arith.constant 0 : index
    %56 = vector.load %arg7[%c0_24, %c0_25] : memref<1x128xf32, #tpu.memory_space<vmem>>, vector<1x128xf32>
    %57 = vector.broadcast %56 : vector<1x128xf32> to vector<16x128xf32>
    %58 = arith.addf %55, %57 : vector<16x128xf32>
    %59 = vector.shape_cast %58 : vector<16x128xf32> to vector<2x8x128xf32>
    %c0_26 = arith.constant 0 : index
    %c0_27 = arith.constant 0 : index
    %c0_28 = arith.constant 0 : index
    %60 = vector.load %arg8[%c0_26, %c0_27, %c0_28] : memref<2x8x128xf32, #tpu.memory_space<vmem>>, vector<2x8x128xf32>
    tpu.vector_store %arg8[%c0_26, %c0_27, %c0_28], %59 {strides = array<i32>} : memref<2x8x128xf32, #tpu.memory_space<vmem>>, vector<2x8x128xf32>,
    return
  }
  func.func @transform_0(%arg0: i32) -> (i32, i32, i32) {
    %c0_i32 = arith.constant 0 : i32
    %c0_i32_0 = arith.constant 0 : i32
    %c0_i32_1 = arith.constant 0 : i32
    return %arg0, %c0_i32, %c0_i32_0 : i32, i32, i32
  }
  func.func @transform_1(%arg0: i32) -> (i32, i32) {
    %c0_i32 = arith.constant 0 : i32
    %c0_i32_0 = arith.constant 0 : i32
    %c0_i32_1 = arith.constant 0 : i32
    return %c0_i32, %c0_i32_0 : i32, i32
  }
  func.func @transform_2(%arg0: i32) -> (i32, i32) {
    %c0_i32 = arith.constant 0 : i32
    %c0_i32_0 = arith.constant 0 : i32
    %c0_i32_1 = arith.constant 0 : i32
    return %c0_i32, %c0_i32_0 : i32, i32
  }
  func.func @transform_3(%arg0: i32) -> (i32, i32) {
    %c0_i32 = arith.constant 0 : i32
    %c0_i32_0 = arith.constant 0 : i32
    %c0_i32_1 = arith.constant 0 : i32
    return %c0_i32, %c0_i32_0 : i32, i32
  }
  func.func @transform_4(%arg0: i32) -> (i32, i32) {
    %c0_i32 = arith.constant 0 : i32
    %c0_i32_0 = arith.constant 0 : i32
    %c0_i32_1 = arith.constant 0 : i32
    return %c0_i32, %c0_i32_0 : i32, i32
  }
  func.func @transform_5(%arg0: i32) -> (i32, i32) {
    %c0_i32 = arith.constant 0 : i32
    %c0_i32_0 = arith.constant 0 : i32
    %c0_i32_1 = arith.constant 0 : i32
    return %c0_i32, %c0_i32_0 : i32, i32
  }
  func.func @transform_6(%arg0: i32) -> (i32, i32) {
    %c0_i32 = arith.constant 0 : i32
    %c0_i32_0 = arith.constant 0 : i32
    %c0_i32_1 = arith.constant 0 : i32
    return %c0_i32, %c0_i32_0 : i32, i32
  }
  func.func @transform_7(%arg0: i32) -> (i32, i32, i32) {
    %c0_i32 = arith.constant 0 : i32
    %c0_i32_0 = arith.constant 0 : i32
    %c0_i32_1 = arith.constant 0 : i32
    return %arg0, %c0_i32, %c0_i32_0 : i32, i32, i32
  }
}

</mosaic_0001>

<llo_original>
// kernel: tpu_custom_call.1
$region0: #{tpu_custom_call.1}
  #allocation0 [shape = 'u32[]', space=smem, size = 0x4, offset = 0x4, fixed_abs, tag = 'smem constant byte address 0x4 - core index']
  #allocation1 [shape = 'u32[144,128]{1,0:T(1,128)}', space=vmem, size = 0x12000, scoped, tag = 'internal scratch']
  %s0 = inlined_call_operand.vmem [shape: f32[2,8,4], index: 0, kind: input, shape index: {}]
  %s1 = inlined_call_operand.vmem [shape: f32[4,288], index: 1, kind: input, shape index: {}]
  %s2 = inlined_call_operand.vmem [shape: f32[1,128], index: 2, kind: input, shape index: {}]
  %s3 = inlined_call_operand.vmem [shape: f32[1,128], index: 3, kind: input, shape index: {}]
  %s4 = inlined_call_operand.vmem [shape: f32[1,128], index: 4, kind: input, shape index: {}]
  %s5 = inlined_call_operand.hbm [shape: f32[128,128], index: 5, kind: input, shape index: {}]
  %s6 = inlined_call_operand.vmem [shape: f32[1,128], index: 6, kind: input, shape index: {}]
  %s7 = inlined_call_operand.hbm [shape: f32[2,8,128], index: 7, kind: output, shape index: {}]
  %s8 = sld [smem:[#allocation0]]
  $region42: #{tpu_custom_call.1} parent=0
    _
  %s10 = ssub.s32 1, %s8
  %s11 = scalar_select 0, %s10, %s8
  $region1: #{tpu_custom_call.1} parent=0
    #allocation2 [shape = 'u8[65536]{0}', space=vmem, size = 0x10000, scoped, tag = 'input window, operand 5, single buffered']
    #allocation3 [shape = 's32[1]{0}', space=sflag, size = 0x4, scoped, tag = 'scoped memory for tpu_custom_call.1']
    #allocation4 [shape = 's32[1]{0}', space=sflag, size = 0x4, scoped, tag = 'scoped memory for tpu_custom_call.1']
    #allocation5 [shape = 'u8[8192]{0}', space=vmem, size = 0x2000, scoped, tag = 'output window, operand 0, single buffered']
    %12 = vsyncpa [#allocation3], 0
    %13 = vsyncpa [#allocation4], 0
    // Predicated region
    $region2: #{tpu_custom_call.1} parent=1 // pred_check
      _
    $region3: #{tpu_custom_call.1} parent=1 // pred_check_branch
      %15 = sbr.rel (0) target = $region5
    $region4: #{tpu_custom_call.1} parent=1 // pred_region
      _
    $region5: #{tpu_custom_call.1} parent=1 // pred_fallthru
      _
    // Predicated region
    $region6: #{tpu_custom_call.1} parent=1 // pred_check
      _
    $region7: #{tpu_custom_call.1} parent=1 // pred_check_branch
      %17 = sbr.rel (0) target = $region9
    $region8: #{tpu_custom_call.1} parent=1 // pred_region
      _
    $region9: #{tpu_custom_call.1} parent=1 // pred_fallthru
      _
    // Predicated region
    $region10: #{tpu_custom_call.1} parent=1 // pred_check
      _
    $region11: #{tpu_custom_call.1} parent=1 // pred_check_branch
      %19 = sbr.rel (0) target = $region13
    $region12: #{tpu_custom_call.1} parent=1 // pred_region
      _
    $region13: #{tpu_custom_call.1} parent=1 // pred_fallthru
      _
    // Predicated region
    $region14: #{tpu_custom_call.1} parent=1 // pred_check
      _
    $region15: #{tpu_custom_call.1} parent=1 // pred_check_branch
      %21 = sbr.rel (0) target = $region17
    $region16: #{tpu_custom_call.1} parent=1 // pred_region
      _
    $region17: #{tpu_custom_call.1} parent=1 // pred_fallthru
      _
    // Predicated region
    $region18: #{tpu_custom_call.1} parent=1 // pred_check
      _
    $region19: #{tpu_custom_call.1} parent=1 // pred_check_branch
      %23 = sbr.rel (0) target = $region21
    $region20: #{tpu_custom_call.1} parent=1 // pred_region
      _
    $region21: #{tpu_custom_call.1} parent=1 // pred_fallthru
      _
    // Predicated region
    $region22: #{tpu_custom_call.1} parent=1 // pred_check
      _
    $region23: #{tpu_custom_call.1} parent=1 // pred_check_branch
      %25 = sbr.rel (0) target = $region25
    $region24: #{tpu_custom_call.1} parent=1 // pred_region
      %s27 = ssub.s32 2048, 2048
      %28 = vsyncadd [#allocation3], %s27
      %s29 = sshll.u32 [#allocation2], 4
      %s30 = int_to_ptr.vmem [resolvable:$true] %s29
      %35 = dma.hbm_to_vmem [thread:$0]  %s5, 2048, %s30, [#allocation3], 128, 128, 8
    $region25: #{tpu_custom_call.1} parent=1 // pred_fallthru
      _
    // Predicated region
    $region26: #{tpu_custom_call.1} parent=1 // pred_check
      _
    $region27: #{tpu_custom_call.1} parent=1 // pred_check_branch
      %37 = sbr.rel (0) target = $region29
    $region28: #{tpu_custom_call.1} parent=1 // pred_region
      _
    $region29: #{tpu_custom_call.1} parent=1 // pred_fallthru
      _
    // Predicated region
    $region30: #{tpu_custom_call.1} parent=1 // pred_check
      _
    $region31: #{tpu_custom_call.1} parent=1 // pred_check_branch
      %39 = sbr.rel (0) target = $region33
    $region32: #{tpu_custom_call.1} parent=1 // pred_region
      %40 = dma.done [#allocation3], 2048
    $region33: #{tpu_custom_call.1} parent=1 // pred_fallthru
      _
    %v41 = vld [vmem:[%s0] sm:$0xff]
    %v42 = vld [vmem:[%s0 + $0x8] sm:$0xff]
    %v43 = vld [vmem:[%s1] sm:$0xff]
    %v44 = vld [vmem:[%s1 + $0x8] sm:$0xf]
    %v47 = vcombine.high %v43, %v43
    %vm48 = vcmask 31744
    %v50 = vsel %vm48, %v41, 0
    %v53 = vsel %vm48, %v42, 0
    %vm55 = vcmask 1043456
    %v56 = vsel %vm55, %v43, 0
    %v58 = vsel %vm55, %v47, 0
    %v60 = vsel %vm55, %v44, 0
    %62 = vmatprep.subr.mxu0 0.0
    %63 = vmatpush1.msra.mxu0 0.0
    %64 = vmatprep.subr.mxu0 0.0
    %65 = vmatpush1.msra.mxu0 0.0
    %66 = vmatprep.subr.mxu0 0.0
    %67 = vmatpush1.msra.mxu0 0.0
    %68 = vmatprep.subr.mxu0 0.0
    %69 = vmatpush1.msra.mxu0 0.0
    %70 = vmatprep.subr.mxu0 0.0
    %71 = vmatpush1.msra.mxu0 0.0
    %72 = vmatprep.subr.mxu0 0.0
    %73 = vmatpush1.msra.mxu0 0.0
    %74 = vmatprep.subr.mxu0 0.0
    %75 = vmatpush1.msra.mxu0 0.0
    %76 = vmatprep.subr.mxu0 0.0
    %77 = vmatpush1.msra.mxu0 0.0
    %78 = vmatprep.subr.mxu0 0.0
    %79 = vmatpush1.msra.mxu0 0.0
    %80 = vmatprep.subr.mxu0 0.0
    %81 = vmatpush1.msra.mxu0 0.0
    %82 = vmatprep.subr.mxu0 0.0
    %83 = vmatpush1.msra.mxu0 0.0
    %84 = vmatprep.subr.mxu0 0.0
    %85 = vmatpush1.msra.mxu0 0.0
    %86 = vmatprep.subr.mxu0 0.0
    %87 = vmatpush1.msra.mxu0 0.0
    %88 = vmatprep.subr.mxu0 0.0
    %89 = vmatpush1.msra.mxu0 0.0
    %90 = vmatprep.subr.mxu0 0.0
    %91 = vmatpush1.msra.mxu0 0.0
    %92 = vmatprep.subr.mxu0 %v58
    %93 = vmatpush1.msra.mxu0 %v56
    %94 = vmatprep.subr.mxu0 0.0
    %95 = vmatpush2.msra.mxu0 0.0
    %96 = vmatprep.subr.mxu0 0.0
    %97 = vmatpush2.msra.mxu0 0.0
    %98 = vmatprep.subr.mxu0 0.0
    %99 = vmatpush2.msra.mxu0 0.0
    %100 = vmatprep.subr.mxu0 0.0
    %101 = vmatpush2.msra.mxu0 0.0
    %102 = vmatprep.subr.mxu0 0.0
    %103 = vmatpush2.msra.mxu0 0.0
    %104 = vmatprep.subr.mxu0 0.0
    %105 = vmatpush2.msra.mxu0 0.0
    %106 = vmatprep.subr.mxu0 0.0
    %107 = vmatpush2.msra.mxu0 0.0
    %108 = vmatprep.subr.mxu0 0.0
    %109 = vmatpush2.msra.mxu0 0.0
    %110 = vmatprep.subr.mxu0 0.0
    %111 = vmatpush2.msra.mxu0 0.0
    %112 = vmatprep.subr.mxu0 0.0
    %113 = vmatpush2.msra.mxu0 0.0
    %114 = vmatprep.subr.mxu0 0.0
    %115 = vmatpush2.msra.mxu0 0.0
    %116 = vmatprep.subr.mxu0 0.0
    %117 = vmatpush2.msra.mxu0 0.0
    %118 = vmatprep.subr.mxu0 0.0
    %119 = vmatpush2.msra.mxu0 0.0
    %120 = vmatprep.subr.mxu0 0.0
    %121 = vmatpush2.msra.mxu0 0.0
    %122 = vmatprep.subr.mxu0 0.0
    %123 = vmatpush2.msra.mxu0 0.0
    %124 = vmatprep.subr.mxu0 0.0
    %125 = vmatpush2.msra.mxu0 0.0
    %126 = vmatprep.mubr.f32.mxu0 0.0
    %127 = vmatmul.mubr.f32.gmra.mxu0 %v50
    %v128 = vpop.f32.mrf.mxu0
    %v129 = vadd.f32 0.0, %v128
    %v130 = vpop.f32.mrf.mxu0
    %v131 = vadd.f32 0.0, %v130
    %132 = vmatprep.mubr.f32.mxu0 0.0
    %133 = vmatmul.mubr.f32.gmra.mxu0 %v53
    %v134 = vpop.f32.mrf.mxu0
    %v135 = vadd.f32 0.0, %v134
    %v136 = vpop.f32.mrf.mxu0
    %v137 = vadd.f32 0.0, %v136
    %138 = vdwg.mxu0
    %139 = vmatprep.subr.mxu0 0.0
    %140 = vmatpush1.msra.mxu0 0.0
    %141 = vmatprep.subr.mxu0 0.0
    %142 = vmatpush1.msra.mxu0 0.0
    %143 = vmatprep.subr.mxu0 0.0
    %144 = vmatpush1.msra.mxu0 0.0
    %145 = vmatprep.subr.mxu0 0.0
    %146 = vmatpush1.msra.mxu0 0.0
    %147 = vmatprep.subr.mxu0 0.0
    %148 = vmatpush1.msra.mxu0 0.0
    %149 = vmatprep.subr.mxu0 0.0
    %150 = vmatpush1.msra.mxu0 0.0
    %151 = vmatprep.subr.mxu0 0.0
    %152 = vmatpush1.msra.mxu0 0.0
    %153 = vmatprep.subr.mxu0 0.0
    %154 = vmatpush1.msra.mxu0 0.0
    %155 = vmatprep.subr.mxu0 0.0
    %156 = vmatpush1.msra.mxu0 0.0
    %157 = vmatprep.subr.mxu0 0.0
    %158 = vmatpush1.msra.mxu0 0.0
    %159 = vmatprep.subr.mxu0 0.0
    %160 = vmatpush1.msra.mxu0 0.0
    %161 = vmatprep.subr.mxu0 0.0
    %162 = vmatpush1.msra.mxu0 0.0
    %163 = vmatprep.subr.mxu0 0.0
    %164 = vmatpush1.msra.mxu0 0.0
    %165 = vmatprep.subr.mxu0 0.0
    %166 = vmatpush1.msra.mxu0 0.0
    %167 = vmatprep.subr.mxu0 0.0
    %168 = vmatpush1.msra.mxu0 0.0
    %169 = vmatprep.subr.mxu0 0.0
    %170 = vmatpush1.msra.mxu0 %v60
    %171 = vmatprep.subr.mxu0 0.0
    %172 = vmatpush2.msra.mxu0 0.0
    %173 = vmatprep.subr.mxu0 0.0
    %174 = vmatpush2.msra.mxu0 0.0
    %175 = vmatprep.subr.mxu0 0.0
    %176 = vmatpush2.msra.mxu0 0.0
    %177 = vmatprep.subr.mxu0 0.0
    %178 = vmatpush2.msra.mxu0 0.0
    %179 = vmatprep.subr.mxu0 0.0
    %180 = vmatpush2.msra.mxu0 0.0
    %181 = vmatprep.subr.mxu0 0.0
    %182 = vmatpush2.msra.mxu0 0.0
    %183 = vmatprep.subr.mxu0 0.0
    %184 = vmatpush2.msra.mxu0 0.0
    %185 = vmatprep.subr.mxu0 0.0
    %186 = vmatpush2.msra.mxu0 0.0
    %187 = vmatprep.subr.mxu0 0.0
    %188 = vmatpush2.msra.mxu0 0.0
    %189 = vmatprep.subr.mxu0 0.0
    %190 = vmatpush2.msra.mxu0 0.0
    %191 = vmatprep.subr.mxu0 0.0
    %192 = vmatpush2.msra.mxu0 0.0
    %193 = vmatprep.subr.mxu0 0.0
    %194 = vmatpush2.msra.mxu0 0.0
    %195 = vmatprep.subr.mxu0 0.0
    %196 = vmatpush2.msra.mxu0 0.0
    %197 = vmatprep.subr.mxu0 0.0
    %198 = vmatpush2.msra.mxu0 0.0
    %199 = vmatprep.subr.mxu0 0.0
    %200 = vmatpush2.msra.mxu0 0.0
    %201 = vmatprep.subr.mxu0 0.0
    %202 = vmatpush2.msra.mxu0 0.0
    %203 = vmatprep.mubr.f32.mxu0 0.0
    %204 = vmatmul.mubr.f32.gmra.mxu0 %v50
    %v205 = vpop.f32.mrf.mxu0
    %v206 = vadd.f32 0.0, %v205
    %v207 = vpop.f32.mrf.mxu0
    %208 = vmatprep.mubr.f32.mxu0 0.0
    %209 = vmatmul.mubr.f32.gmra.mxu0 %v53
    %v210 = vpop.f32.mrf.mxu0
    %v211 = vadd.f32 0.0, %v210
    %v212 = vpop.f32.mrf.mxu0
    %213 = vdwg.mxu0
    %215 = vrot.lane.b32.xlu0 %v206, 112
    %v216 = vpop.permute.xlu0 %215
    %vm217 = vcmask 130048
    %v218 = vsel %vm217, %v206, 0
    %v220 = vsel %vm217, %v216, 0
    %222 = vmatprep.subr.mxu0 0.0
    %223 = vmatpush1.xpose.msra.mxu0 0.0
    %224 = vmatprep.subr.mxu0 0.0
    %225 = vmatpush1.xpose.msra.mxu0 0.0
    %226 = vmatprep.subr.mxu0 0.0
    %227 = vmatpush1.xpose.msra.mxu0 0.0
    %228 = vmatprep.subr.mxu0 0.0
    %229 = vmatpush1.xpose.msra.mxu0 0.0
    %230 = vmatprep.subr.mxu0 0.0
    %231 = vmatpush1.xpose.msra.mxu0 0.0
    %232 = vmatprep.subr.mxu0 0.0
    %233 = vmatpush1.xpose.msra.mxu0 0.0
    %234 = vmatprep.subr.mxu0 0.0
    %235 = vmatpush1.xpose.msra.mxu0 0.0
    %236 = vmatprep.subr.mxu0 0.0
    %237 = vmatpush1.xpose.msra.mxu0 0.0
    %238 = vmatprep.subr.mxu0 0.0
    %239 = vmatpush1.xpose.msra.mxu0 0.0
    %240 = vmatprep.subr.mxu0 0.0
    %241 = vmatpush1.xpose.msra.mxu0 0.0
    %242 = vmatprep.subr.mxu0 0.0
    %243 = vmatpush1.xpose.msra.mxu0 0.0
    %244 = vmatprep.subr.mxu0 0.0
    %245 = vmatpush1.xpose.msra.mxu0 0.0
    %246 = vmatprep.subr.mxu0 0.0
    %247 = vmatpush1.xpose.msra.mxu0 0.0
    %248 = vmatprep.subr.mxu0 0.0
    %249 = vmatpush1.xpose.msra.mxu0 0.0
    %250 = vmatprep.subr.mxu0 0.0
    %251 = vmatpush1.xpose.msra.mxu0 0.0
    %252 = vmatprep.subr.mxu0 0.0
    %253 = vmatpush1.xpose.msra.mxu0 %v220
    %254 = vmatprep.subr.mxu0 0.0
    %255 = vmatpush2.xpose.msra.mxu0 0.0
    %256 = vmatprep.subr.mxu0 0.0
    %257 = vmatpush2.xpose.msra.mxu0 0.0
    %258 = vmatprep.subr.mxu0 0.0
    %259 = vmatpush2.xpose.msra.mxu0 0.0
    %260 = vmatprep.subr.mxu0 0.0
    %261 = vmatpush2.xpose.msra.mxu0 0.0
    %262 = vmatprep.subr.mxu0 0.0
    %263 = vmatpush2.xpose.msra.mxu0 0.0
    %264 = vmatprep.subr.mxu0 0.0
    %265 = vmatpush2.xpose.msra.mxu0 0.0
    %266 = vmatprep.subr.mxu0 0.0
    %267 = vmatpush2.xpose.msra.mxu0 0.0
    %268 = vmatprep.subr.mxu0 0.0
    %269 = vmatpush2.xpose.msra.mxu0 0.0
    %270 = vmatprep.subr.mxu0 0.0
    %271 = vmatpush2.xpose.msra.mxu0 0.0
    %272 = vmatprep.subr.mxu0 0.0
    %273 = vmatpush2.xpose.msra.mxu0 0.0
    %274 = vmatprep.subr.mxu0 0.0
    %275 = vmatpush2.xpose.msra.mxu0 0.0
    %276 = vmatprep.subr.mxu0 0.0
    %277 = vmatpush2.xpose.msra.mxu0 0.0
    %278 = vmatprep.subr.mxu0 0.0
    %279 = vmatpush2.xpose.msra.mxu0 0.0
    %280 = vmatprep.subr.mxu0 0.0
    %281 = vmatpush2.xpose.msra.mxu0 0.0
    %282 = vmatprep.subr.mxu0 0.0
    %283 = vmatpush2.xpose.msra.mxu0 0.0
    %284 = vmatprep.subr.mxu0 0.0
    %285 = vmatpush2.xpose.msra.mxu0 0.0
    %286 = vmatprep.mubr.f32.mxu0 0.0
    %287 = vmatmul.mubr.f32.gmra.mxu0 %v218
    %v288 = vpop.f32.mrf.mxu0
    %v289 = vadd.f32 0.0, %v288
    %v290 = vpop.f32.mrf.mxu0
    %291 = vdwg.mxu0
    %293 = vrot.lane.b32.xlu0 %v211, 112
    %v294 = vpop.permute.xlu0 %293
    %v295 = vsel %vm217, %v211, 0
    %v297 = vsel %vm217, %v294, 0
    %299 = vmatprep.subr.mxu0 0.0
    %300 = vmatpush1.xpose.msra.mxu0 0.0
    %301 = vmatprep.subr.mxu0 0.0
    %302 = vmatpush1.xpose.msra.mxu0 0.0
    %303 = vmatprep.subr.mxu0 0.0
    %304 = vmatpush1.xpose.msra.mxu0 0.0
    %305 = vmatprep.subr.mxu0 0.0
    %306 = vmatpush1.xpose.msra.mxu0 0.0
    %307 = vmatprep.subr.mxu0 0.0
    %308 = vmatpush1.xpose.msra.mxu0 0.0
    %309 = vmatprep.subr.mxu0 0.0
    %310 = vmatpush1.xpose.msra.mxu0 0.0
    %311 = vmatprep.subr.mxu0 0.0
    %312 = vmatpush1.xpose.msra.mxu0 0.0
    %313 = vmatprep.subr.mxu0 0.0
    %314 = vmatpush1.xpose.msra.mxu0 0.0
    %315 = vmatprep.subr.mxu0 0.0
    %316 = vmatpush1.xpose.msra.mxu0 0.0
    %317 = vmatprep.subr.mxu0 0.0
    %318 = vmatpush1.xpose.msra.mxu0 0.0
    %319 = vmatprep.subr.mxu0 0.0
    %320 = vmatpush1.xpose.msra.mxu0 0.0
    %321 = vmatprep.subr.mxu0 0.0
    %322 = vmatpush1.xpose.msra.mxu0 0.0
    %323 = vmatprep.subr.mxu0 0.0
    %324 = vmatpush1.xpose.msra.mxu0 0.0
    %325 = vmatprep.subr.mxu0 0.0
    %326 = vmatpush1.xpose.msra.mxu0 0.0
    %327 = vmatprep.subr.mxu0 0.0
    %328 = vmatpush1.xpose.msra.mxu0 0.0
    %329 = vmatprep.subr.mxu0 0.0
    %330 = vmatpush1.xpose.msra.mxu0 %v297
    %331 = vmatprep.subr.mxu0 0.0
    %332 = vmatpush2.xpose.msra.mxu0 0.0
    %333 = vmatprep.subr.mxu0 0.0
    %334 = vmatpush2.xpose.msra.mxu0 0.0
    %335 = vmatprep.subr.mxu0 0.0
    %336 = vmatpush2.xpose.msra.mxu0 0.0
    %337 = vmatprep.subr.mxu0 0.0
    %338 = vmatpush2.xpose.msra.mxu0 0.0
    %339 = vmatprep.subr.mxu0 0.0
    %340 = vmatpush2.xpose.msra.mxu0 0.0
    %341 = vmatprep.subr.mxu0 0.0
    %342 = vmatpush2.xpose.msra.mxu0 0.0
    %343 = vmatprep.subr.mxu0 0.0
    %344 = vmatpush2.xpose.msra.mxu0 0.0
    %345 = vmatprep.subr.mxu0 0.0
    %346 = vmatpush2.xpose.msra.mxu0 0.0
    %347 = vmatprep.subr.mxu0 0.0
    %348 = vmatpush2.xpose.msra.mxu0 0.0
    %349 = vmatprep.subr.mxu0 0.0
    %350 = vmatpush2.xpose.msra.mxu0 0.0
    %351 = vmatprep.subr.mxu0 0.0
    %352 = vmatpush2.xpose.msra.mxu0 0.0
    %353 = vmatprep.subr.mxu0 0.0
    %354 = vmatpush2.xpose.msra.mxu0 0.0
    %355 = vmatprep.subr.mxu0 0.0
    %356 = vmatpush2.xpose.msra.mxu0 0.0
    %357 = vmatprep.subr.mxu0 0.0
    %358 = vmatpush2.xpose.msra.mxu0 0.0
    %359 = vmatprep.subr.mxu0 0.0
    %360 = vmatpush2.xpose.msra.mxu0 0.0
    %361 = vmatprep.subr.mxu0 0.0
    %362 = vmatpush2.xpose.msra.mxu0 0.0
    %363 = vmatprep.mubr.f32.mxu0 0.0
    %364 = vmatmul.mubr.f32.gmra.mxu0 %v295
    %v365 = vpop.f32.mrf.mxu0
    %v366 = vadd.f32 0.0, %v365
    %v367 = vpop.f32.mrf.mxu0
    %368 = vdwg.mxu0
    %v369 = vmul.f32 %v289, 0.25
    %v370 = vmul.f32 %v366, 0.25
    %vm371 = vcmask 64512
    %v372 = vsel %vm371, %v369, -inf
    %373 = vmax.xlane.f32.xlu0 %v372
    %v374 = vpop.xlane.xlu0 %373
    %v375 = vsel %vm371, %v370, -inf
    %376 = vmax.xlane.f32.xlu0 %v375
    %v377 = vpop.xlane.xlu0 %376
    %v378 = vsub.f32 %v369, %v374
    %v379 = vsub.f32 %v370, %v377
    %v380 = vmul.f32 %v378, 1.442695
    %v381 = vpow.pop %v380
    %v382 = vmul.f32 %v379, 1.442695
    %v383 = vpow.pop %v382
    %v384 = vsel %vm371, %v381, 0.0
    %385 = vadd.xlane.f32.xlu0 %v384
    %v386 = vpop.xlane.xlu0 %385
    %v387 = vsel %vm371, %v383, 0.0
    %388 = vadd.xlane.f32.xlu0 %v387
    %v389 = vpop.xlane.xlu0 %388
    %v390 = vrcp.pop %v386
    %v391 = vrcp.pop %v389
    %v392 = vmul.f32 %v381, %v390
    %v393 = vmul.f32 %v383, %v391
    %v395 = vsel %vm371, %v392, 0
    %397 = vmatprep.subr.mxu0 0.0
    %398 = vmatpush1.msra.mxu0 0.0
    %399 = vmatprep.subr.mxu0 0.0
    %400 = vmatpush1.msra.mxu0 0.0
    %401 = vmatprep.subr.mxu0 0.0
    %402 = vmatpush1.msra.mxu0 0.0
    %403 = vmatprep.subr.mxu0 0.0
    %404 = vmatpush1.msra.mxu0 0.0
    %405 = vmatprep.subr.mxu0 0.0
    %406 = vmatpush1.msra.mxu0 0.0
    %407 = vmatprep.subr.mxu0 0.0
    %408 = vmatpush1.msra.mxu0 0.0
    %409 = vmatprep.subr.mxu0 0.0
    %410 = vmatpush1.msra.mxu0 0.0
    %411 = vmatprep.subr.mxu0 0.0
    %412 = vmatpush1.msra.mxu0 0.0
    %413 = vmatprep.subr.mxu0 0.0
    %414 = vmatpush1.msra.mxu0 0.0
    %415 = vmatprep.subr.mxu0 0.0
    %416 = vmatpush1.msra.mxu0 0.0
    %417 = vmatprep.subr.mxu0 0.0
    %418 = vmatpush1.msra.mxu0 0.0
    %419 = vmatprep.subr.mxu0 0.0
    %420 = vmatpush1.msra.mxu0 0.0
    %421 = vmatprep.subr.mxu0 0.0
    %422 = vmatpush1.msra.mxu0 0.0
    %423 = vmatprep.subr.mxu0 0.0
    %424 = vmatpush1.msra.mxu0 0.0
    %425 = vmatprep.subr.mxu0 0.0
    %426 = vmatpush1.msra.mxu0 0.0
    %427 = vmatprep.subr.mxu0 0.0
    %428 = vmatpush1.msra.mxu0 %v129
    %429 = vmatprep.subr.mxu0 0.0
    %430 = vmatpush2.msra.mxu0 0.0
    %431 = vmatprep.subr.mxu0 0.0
    %432 = vmatpush2.msra.mxu0 0.0
    %433 = vmatprep.subr.mxu0 0.0
    %434 = vmatpush2.msra.mxu0 0.0
    %435 = vmatprep.subr.mxu0 0.0
    %436 = vmatpush2.msra.mxu0 0.0
    %437 = vmatprep.subr.mxu0 0.0
    %438 = vmatpush2.msra.mxu0 0.0
    %439 = vmatprep.subr.mxu0 0.0
    %440 = vmatpush2.msra.mxu0 0.0
    %441 = vmatprep.subr.mxu0 0.0
    %442 = vmatpush2.msra.mxu0 0.0
    %443 = vmatprep.subr.mxu0 0.0
    %444 = vmatpush2.msra.mxu0 0.0
    %445 = vmatprep.subr.mxu0 0.0
    %446 = vmatpush2.msra.mxu0 0.0
    %447 = vmatprep.subr.mxu0 0.0
    %448 = vmatpush2.msra.mxu0 0.0
    %449 = vmatprep.subr.mxu0 0.0
    %450 = vmatpush2.msra.mxu0 0.0
    %451 = vmatprep.subr.mxu0 0.0
    %452 = vmatpush2.msra.mxu0 0.0
    %453 = vmatprep.subr.mxu0 0.0
    %454 = vmatpush2.msra.mxu0 0.0
    %455 = vmatprep.subr.mxu0 0.0
    %456 = vmatpush2.msra.mxu0 0.0
    %457 = vmatprep.subr.mxu0 0.0
    %458 = vmatpush2.msra.mxu0 0.0
    %459 = vmatprep.subr.mxu0 0.0
    %460 = vmatpush2.msra.mxu0 0.0
    %461 = vmatprep.mubr.f32.mxu0 0.0
    %462 = vmatmul.mubr.f32.gmra.mxu0 %v395
    %v463 = vpop.f32.mrf.mxu0
    %v464 = vadd.f32 0.0, %v463
    %v465 = vpop.f32.mrf.mxu0
    %466 = vdwg.mxu0
    %v468 = vsel %vm371, %v393, 0
    %470 = vmatprep.subr.mxu0 0.0
    %471 = vmatpush1.msra.mxu0 0.0
    %472 = vmatprep.subr.mxu0 0.0
    %473 = vmatpush1.msra.mxu0 0.0
    %474 = vmatprep.subr.mxu0 0.0
    %475 = vmatpush1.msra.mxu0 0.0
    %476 = vmatprep.subr.mxu0 0.0
    %477 = vmatpush1.msra.mxu0 0.0
    %478 = vmatprep.subr.mxu0 0.0
    %479 = vmatpush1.msra.mxu0 0.0
    %480 = vmatprep.subr.mxu0 0.0
    %481 = vmatpush1.msra.mxu0 0.0
    %482 = vmatprep.subr.mxu0 0.0
    %483 = vmatpush1.msra.mxu0 0.0
    %484 = vmatprep.subr.mxu0 0.0
    %485 = vmatpush1.msra.mxu0 0.0
    %486 = vmatprep.subr.mxu0 0.0
    %487 = vmatpush1.msra.mxu0 0.0
    %488 = vmatprep.subr.mxu0 0.0
    %489 = vmatpush1.msra.mxu0 0.0
    %490 = vmatprep.subr.mxu0 0.0
    %491 = vmatpush1.msra.mxu0 0.0
    %492 = vmatprep.subr.mxu0 0.0
    %493 = vmatpush1.msra.mxu0 0.0
    %494 = vmatprep.subr.mxu0 0.0
    %495 = vmatpush1.msra.mxu0 0.0
    %496 = vmatprep.subr.mxu0 0.0
    %497 = vmatpush1.msra.mxu0 0.0
    %498 = vmatprep.subr.mxu0 0.0
    %499 = vmatpush1.msra.mxu0 0.0
    %500 = vmatprep.subr.mxu0 0.0
    %501 = vmatpush1.msra.mxu0 %v135
    %502 = vmatprep.subr.mxu0 0.0
    %503 = vmatpush2.msra.mxu0 0.0
    %504 = vmatprep.subr.mxu0 0.0
    %505 = vmatpush2.msra.mxu0 0.0
    %506 = vmatprep.subr.mxu0 0.0
    %507 = vmatpush2.msra.mxu0 0.0
    %508 = vmatprep.subr.mxu0 0.0
    %509 = vmatpush2.msra.mxu0 0.0
    %510 = vmatprep.subr.mxu0 0.0
    %511 = vmatpush2.msra.mxu0 0.0
    %512 = vmatprep.subr.mxu0 0.0
    %513 = vmatpush2.msra.mxu0 0.0
    %514 = vmatprep.subr.mxu0 0.0
    %515 = vmatpush2.msra.mxu0 0.0
    %516 = vmatprep.subr.mxu0 0.0
    %517 = vmatpush2.msra.mxu0 0.0
    %518 = vmatprep.subr.mxu0 0.0
    %519 = vmatpush2.msra.mxu0 0.0
    %520 = vmatprep.subr.mxu0 0.0
    %521 = vmatpush2.msra.mxu0 0.0
    %522 = vmatprep.subr.mxu0 0.0
    %523 = vmatpush2.msra.mxu0 0.0
    %524 = vmatprep.subr.mxu0 0.0
    %525 = vmatpush2.msra.mxu0 0.0
    %526 = vmatprep.subr.mxu0 0.0
    %527 = vmatpush2.msra.mxu0 0.0
    %528 = vmatprep.subr.mxu0 0.0
    %529 = vmatpush2.msra.mxu0 0.0
    %530 = vmatprep.subr.mxu0 0.0
    %531 = vmatpush2.msra.mxu0 0.0
    %532 = vmatprep.subr.mxu0 0.0
    %533 = vmatpush2.msra.mxu0 0.0
    %534 = vmatprep.mubr.f32.mxu0 0.0
    %535 = vmatmul.mubr.f32.gmra.mxu0 %v468
    %v536 = vpop.f32.mrf.mxu0
    %v537 = vadd.f32 0.0, %v536
    %v538 = vpop.f32.mrf.mxu0
    %539 = vdwg.mxu0
    %v540 = vadd.f32 %v464, %v131
    %v541 = vadd.f32 %v537, %v137
    %v542 = vld [vmem:[%s2] sm:$0x1]
    %v544 = vlaneseq
    %v545 = vshrl.u32 %v544, 7
    %v546 = vsub.s32 0, %v545
    %v547 = vrot.slane %v542, %v546
    %v549 = vadd.f32 %v540, %v547
    %v550 = vadd.f32 %v541, %v547
    %551 = vadd.xlane.f32.xlu0 %v549
    %v552 = vpop.xlane.xlu0 %551
    %553 = vadd.xlane.f32.xlu0 %v550
    %v554 = vpop.xlane.xlu0 %553
    %v555 = vrcp.pop 128.0
    %v556 = vmul.f32 %v552, %v555
    %v557 = vmul.f32 %v554, %v555
    %v558 = vsub.f32 %v549, %v556
    %v559 = vsub.f32 %v550, %v557
    %v560 = vmul.f32 %v558, %v558
    %v561 = vmul.f32 %v559, %v559
    %562 = vadd.xlane.f32.xlu0 %v560
    %v563 = vpop.xlane.xlu0 %562
    %564 = vadd.xlane.f32.xlu0 %v561
    %v565 = vpop.xlane.xlu0 %564
    %v566 = vmul.f32 %v563, %v555
    %v567 = vmul.f32 %v565, %v555
    %v568 = vadd.f32 %v566, 1e-05
    %v569 = vadd.f32 %v567, 1e-05
    %v570 = vrsqrt.pop %v568
    %v571 = vrsqrt.pop %v569
    %v572 = vmul.f32 %v558, %v570
    %v573 = vmul.f32 %v559, %v571
    %v574 = vld [vmem:[%s3] sm:$0x1]
    %v576 = vlaneseq
    %v577 = vshrl.u32 %v576, 7
    %v578 = vsub.s32 0, %v577
    %v579 = vrot.slane %v574, %v578
    %v581 = vmul.f32 %v572, %v579
    %v582 = vmul.f32 %v573, %v579
    %v583 = vld [vmem:[%s4] sm:$0x1]
    %v585 = vlaneseq
    %v586 = vshrl.u32 %v585, 7
    %v587 = vsub.s32 0, %v586
    %v588 = vrot.slane %v583, %v587
    %v590 = vadd.f32 %v581, %v588
    %v591 = vadd.f32 %v582, %v588
    %v592 = vmax.f32 %v590, 0.0
    %v593 = vmax.f32 %v591, 0.0
    %v594 = vld [vmem:[#allocation2] sm:$0xff]
    %v595 = vld [vmem:[#allocation2 + $0x8] sm:$0xff]
    %v596 = vld [vmem:[#allocation2 + $0x10] sm:$0xff]
    %v597 = vld [vmem:[#allocation2 + $0x18] sm:$0xff]
    %v598 = vld [vmem:[#allocation2 + $0x20] sm:$0xff]
    %v599 = vld [vmem:[#allocation2 + $0x28] sm:$0xff]
    %v600 = vld [vmem:[#allocation2 + $0x30] sm:$0xff]
    %v601 = vld [vmem:[#allocation2 + $0x38] sm:$0xff]
    %v602 = vld [vmem:[#allocation2 + $0x40] sm:$0xff]
    %v603 = vld [vmem:[#allocation2 + $0x48] sm:$0xff]
    %v604 = vld [vmem:[#allocation2 + $0x50] sm:$0xff]
    %v605 = vld [vmem:[#allocation2 + $0x58] sm:$0xff]
    %v606 = vld [vmem:[#allocation2 + $0x60] sm:$0xff]
    %v607 = vld [vmem:[#allocation2 + $0x68] sm:$0xff]
    %v608 = vld [vmem:[#allocation2 + $0x70] sm:$0xff]
    %v609 = vld [vmem:[#allocation2 + $0x78] sm:$0xff]
    %v610 = vld [vmem:[%s6] sm:$0x1]
    %v612 = vlaneseq
    %v613 = vshrl.u32 %v612, 7
    %v614 = vsub.s32 0, %v613
    %v615 = vrot.slane %v610, %v614
    %617 = vmatprep.subr.mxu0 0.0
    %618 = vmatpush1.msra.mxu0 %v609
    %619 = vmatprep.subr.mxu0 0.0
    %620 = vmatpush1.msra.mxu0 %v608
    %621 = vmatprep.subr.mxu0 0.0
    %622 = vmatpush1.msra.mxu0 %v607
    %623 = vmatprep.subr.mxu0 0.0
    %624 = vmatpush1.msra.mxu0 %v606
    %625 = vmatprep.subr.mxu0 0.0
    %626 = vmatpush1.msra.mxu0 %v605
    %627 = vmatprep.subr.mxu0 0.0
    %628 = vmatpush1.msra.mxu0 %v604
    %629 = vmatprep.subr.mxu0 0.0
    %630 = vmatpush1.msra.mxu0 %v603
    %631 = vmatprep.subr.mxu0 0.0
    %632 = vmatpush1.msra.mxu0 %v602
    %633 = vmatprep.subr.mxu0 0.0
    %634 = vmatpush1.msra.mxu0 %v601
    %635 = vmatprep.subr.mxu0 0.0
    %636 = vmatpush1.msra.mxu0 %v600
    %637 = vmatprep.subr.mxu0 0.0
    %638 = vmatpush1.msra.mxu0 %v599
    %639 = vmatprep.subr.mxu0 0.0
    %640 = vmatpush1.msra.mxu0 %v598
    %641 = vmatprep.subr.mxu0 0.0
    %642 = vmatpush1.msra.mxu0 %v597
    %643 = vmatprep.subr.mxu0 0.0
    %644 = vmatpush1.msra.mxu0 %v596
    %645 = vmatprep.subr.mxu0 0.0
    %646 = vmatpush1.msra.mxu0 %v595
    %647 = vmatprep.subr.mxu0 0.0
    %648 = vmatpush1.msra.mxu0 %v594
    %649 = vmatprep.subr.mxu0 0.0
    %650 = vmatpush2.msra.mxu0 0.0
    %651 = vmatprep.subr.mxu0 0.0
    %652 = vmatpush2.msra.mxu0 0.0
    %653 = vmatprep.subr.mxu0 0.0
    %654 = vmatpush2.msra.mxu0 0.0
    %655 = vmatprep.subr.mxu0 0.0
    %656 = vmatpush2.msra.mxu0 0.0
    %657 = vmatprep.subr.mxu0 0.0
    %658 = vmatpush2.msra.mxu0 0.0
    %659 = vmatprep.subr.mxu0 0.0
    %660 = vmatpush2.msra.mxu0 0.0
    %661 = vmatprep.subr.mxu0 0.0
    %662 = vmatpush2.msra.mxu0 0.0
    %663 = vmatprep.subr.mxu0 0.0
    %664 = vmatpush2.msra.mxu0 0.0
    %665 = vmatprep.subr.mxu0 0.0
    %666 = vmatpush2.msra.mxu0 0.0
    %667 = vmatprep.subr.mxu0 0.0
    %668 = vmatpush2.msra.mxu0 0.0
    %669 = vmatprep.subr.mxu0 0.0
    %670 = vmatpush2.msra.mxu0 0.0
    %671 = vmatprep.subr.mxu0 0.0
    %672 = vmatpush2.msra.mxu0 0.0
    %673 = vmatprep.subr.mxu0 0.0
    %674 = vmatpush2.msra.mxu0 0.0
    %675 = vmatprep.subr.mxu0 0.0
    %676 = vmatpush2.msra.mxu0 0.0
    %677 = vmatprep.subr.mxu0 0.0
    %678 = vmatpush2.msra.mxu0 0.0
    %679 = vmatprep.subr.mxu0 0.0
    %680 = vmatpush2.msra.mxu0 0.0
    %681 = vmatprep.mubr.f32.mxu0 0.0
    %682 = vmatmul.mubr.f32.gmra.mxu0 %v592
    %v683 = vpop.f32.mrf.mxu0
    %v684 = vadd.f32 %v615, %v683
    %v685 = vpop.f32.mrf.mxu0
    %686 = vmatprep.mubr.f32.mxu0 0.0
    %687 = vmatmul.mubr.f32.gmra.mxu0 %v593
    %v688 = vpop.f32.mrf.mxu0
    %v689 = vadd.f32 %v615, %v688
    %v690 = vpop.f32.mrf.mxu0
    %691 = vdwg.mxu0
    %692 = vst [vmem:[#allocation5] sm:$0xff] %v684
    %693 = vst [vmem:[#allocation5 + $0x8] sm:$0xff] %v689
    // Predicated region
    $region34: #{tpu_custom_call.1} parent=1 // pred_check
      _
    $region35: #{tpu_custom_call.1} parent=1 // pred_check_branch
      %695 = sbr.rel (0) target = $region37
    $region36: #{tpu_custom_call.1} parent=1 // pred_region
      %s697 = ssub.s32 256, 256
      %698 = vsyncadd [#allocation4], %s697
      %s699 = sshll.u32 [#allocation5], 4
      %s700 = int_to_ptr.vmem [resolvable:$true] %s699
      %705 = dma.vmem_to_hbm [thread:$0]  %s700, 256, %s7, [#allocation4], 128, 128, 8
    $region37: #{tpu_custom_call.1} parent=1 // pred_fallthru
      _
    // Predicated region
    $region38: #{tpu_custom_call.1} parent=1 // pred_check
      _
    $region39: #{tpu_custom_call.1} parent=1 // pred_check_branch
      %707 = sbr.rel (0) target = $region41
    $region40: #{tpu_custom_call.1} parent=1 // pred_region
      %708 = dma.done [#allocation4], 256
    $region41: #{tpu_custom_call.1} parent=1 // pred_fallthru
      _
    %709 = vsyncpa [#allocation3], 1
    %710 = vsyncpa [#allocation4], 1

</llo_original>
